<compile_context>
chip_gen: v6e
topology: v6e:2x2x1
jax: 0.10.0
libtpu: 0.0.40
codegen_flags: <defaults>
</compile_context>

<pallas_src>
import functools

import jax
import jax.numpy as jnp
from jax.experimental import pallas as pl
from jax.experimental.pallas import tpu as pltpu


def _compiler_params():
    # "parallel" over batch lets a v7x chip's two TensorCores split the grid;
    # 32 MiB is generous for these blocks and below v7x's 64 MiB physical VMEM.
    return pltpu.CompilerParams(
        dimension_semantics=("parallel",),
        vmem_limit_bytes=32 * 1024 * 1024,
    )


def _stage_3x3_taps(src, col_ref, H, W):
    """Stage the 9 shifted 3x3-conv taps of `src` (Cin, H*W) into `col_ref`
    (9*Cin, H*W) using lane rolls + boundary masks.

    Tap t=(ky,kx): out[p] = src[p + (ky-1)*W + (kx-1)] with zeros outside the
    HxW map -- exactly a padding=1 3x3 conv window, built without any padded
    copy or strided-window reshape (pure lane rotations + selects).
    """
    HW = H * W
    Cin = src.shape[0]
    lane = jax.lax.broadcasted_iota(jnp.int32, (1, HW), 1)
    cidx = lane % W                               # column index within a row
    for t in range(9):
        dy, dx = t // 3 - 1, t % 3 - 1
        s = dy * W + dx                           # flattened lane shift
        if s == 0:
            v = src
        else:
            v = pltpu.roll(src, shift=(-s) % HW, axis=1)     # out[p] = src[p+s]
            ok = None
            if dx == -1:
                ok = cidx >= 1
            elif dx == 1:
                ok = cidx <= W - 2
            if dy == -1:
                oy = lane >= W
                ok = oy if ok is None else jnp.logical_and(ok, oy)
            elif dy == 1:
                oy = lane < HW - W
                ok = oy if ok is None else jnp.logical_and(ok, oy)
            v = jnp.where(ok, v, 0.0)
        col_ref[pl.ds(t * Cin, Cin), :] = v


# ---------------------------------------------------------------------------
# Kernel A: fused  conv_reduce(3x3 + BN + ReLU)  +  conv_project(1x1)
#                  + spatial softmax + basis contraction       (one level)
#   xflat_ref : (1, C, HW)    flattened input feature (bf16)
#   wred_ref  : (9*C, IC)     conv_reduce weights, tap-major rows (bf16)
#   rs_ref    : (IC, 1)       folded BN scale (f32)
#   rb_ref    : (IC, 1)       folded BN bias  (f32)
#   wp_ref    : (C, base)     1x1 projection weight (bf16)
# Outputs:
#   attmap_ref : (1, base, HW)  pre-softmax attention map (== NCHW view, aux)
#   basis_ref  : (1, base, IC)  per-level basis (transposed vs. PyTorch bmm);
#                               lane dim is IC (lane-dense at production IC).
# Scratch:
#   col_ref    : (9*C, HW) f32  in-VMEM im2col buffer.
# ---------------------------------------------------------------------------
def _reduce_project_basis_kernel(xflat_ref, wred_ref, rs_ref, rb_ref, wp_ref,
                                 attmap_ref, basis_ref, col_ref, *, H, W):
    xb = xflat_ref[0]                                        # (C, HW) bf16
    x = xb.astype(jnp.float32)

    # conv_reduce: one deep matmul with contraction 9*C (no per-tap matmuls).
    _stage_3x3_taps(x, col_ref, H, W)
    col = col_ref[...].astype(jnp.bfloat16)                  # (9*C, HW)
    acc = jax.lax.dot_general(
        wred_ref[...], col, (((0,), (0,)), ((), ())),
        preferred_element_type=jnp.float32)                  # (IC, HW)
    fred = jnp.maximum(acc * rs_ref[...] + rb_ref[...], 0.0)  # BN + ReLU (f32)

    # conv_project (1x1) on the raw (center-tap) feature -> (base, HW).
    att = jax.lax.dot_general(
        wp_ref[...], xb, (((0,), (0,)), ((), ())),
        preferred_element_type=jnp.float32)
    attmap_ref[0] = att                                      # pre-softmax (aux)

    # Spatial softmax over HW (lanes) per basis channel.
    m = jnp.max(att, axis=-1, keepdims=True)
    e = jnp.exp(att - m)
    sm = e * pl.reciprocal(jnp.sum(e, axis=-1, keepdims=True), approx=True)

    # basis (base, IC) = softmax(att) @ fred^T   (contract over HW)
    basis_ref[0] = jax.lax.dot_general(
        sm.astype(jnp.bfloat16), fred.astype(jnp.bfloat16),
        (((1,), (1,)), ((), ())),
        preferred_element_type=jnp.float32)


def reduce_project_basis(xflat, wred, rscale, rbias, wp, H, W):
    B, C, HW = xflat.shape
    IC = wred.shape[1]
    base = wp.shape[1]
    kern = functools.partial(_reduce_project_basis_kernel, H=H, W=W)
    return pl.pallas_call(
        kern,
        out_shape=(jax.ShapeDtypeStruct((B, base, HW), jnp.float32),
                   jax.ShapeDtypeStruct((B, base, IC), jnp.float32)),
        grid=(B,),
        in_specs=[
            pl.BlockSpec((1, C, HW), lambda b: (b, 0, 0)),
            pl.BlockSpec((9 * C, IC), lambda b: (0, 0)),
            pl.BlockSpec((IC, 1), lambda b: (0, 0)),
            pl.BlockSpec((IC, 1), lambda b: (0, 0)),
            pl.BlockSpec((C, base), lambda b: (0, 0)),
        ],
        out_specs=(pl.BlockSpec((1, base, HW), lambda b: (b, 0, 0)),
                   pl.BlockSpec((1, base, IC), lambda b: (b, 0, 0))),
        scratch_shapes=[pltpu.VMEM((9 * C, HW), jnp.float32)],
        compiler_params=_compiler_params(),
    )(xflat, wred, rscale, rbias, wp)


# ---------------------------------------------------------------------------
# Kernel B: fused  conv_reproject(1x1) + channel softmax + rebuild(bmm)
#                  + conv_out(3x3 + BN + ReLU) + residual add   (one level)
#   xflat_ref : (1, C, HW)    flattened input feature (bf16) -- also residual
#   wrp_ref   : (C, K)        1x1 reprojection weight, K = (i+1)*base (bf16)
#   cross_ref : (1, Kall, IC) full CrossBase (f32); first K rows used
#   wout_ref  : (9*IC, C)     conv_out weights, tap-major rows (bf16)
#   os_ref    : (C, 1)        folded BN scale (f32)
#   ob_ref    : (C, 1)        folded BN bias  (f32)
# Output:
#   o_ref     : (1, C, HW)    relu(bn(conv_out(rebuilt))) + feat   (f32)
# Scratch:
#   col_ref   : (9*IC, HW) f32  in-VMEM im2col buffer of the rebuilt map.
# ---------------------------------------------------------------------------
def _rebuild_out_kernel(xflat_ref, wrp_ref, cross_ref, wout_ref, os_ref, ob_ref,
                        o_ref, col_ref, *, H, W, K):
    xb = xflat_ref[0]                                        # (C, HW) bf16

    # conv_reproject (1x1) -> (K, HW); softmax over K per spatial position.
    rw = jax.lax.dot_general(
        wrp_ref[...], xb, (((0,), (0,)), ((), ())),
        preferred_element_type=jnp.float32)                  # (K, HW)
    m = jnp.max(rw, axis=0, keepdims=True)
    e = jnp.exp(rw - m)
    sm = e * pl.reciprocal(jnp.sum(e, axis=0, keepdims=True), approx=True)

    # rebuild (IC, HW) = CrossBase[:K].T @ softmaxed reprojection weights.
    cb = cross_ref[0][:K, :].astype(jnp.bfloat16)            # (K, IC)
    rebuilt = jax.lax.dot_general(
        cb, sm.astype(jnp.bfloat16), (((0,), (0,)), ((), ())),
        preferred_element_type=jnp.float32)                  # (IC, HW)

    # conv_out: one deep matmul with contraction 9*IC over rolled taps.
    _stage_3x3_taps(rebuilt, col_ref, H, W)
    col = col_ref[...].astype(jnp.bfloat16)                  # (9*IC, HW)
    acc = jax.lax.dot_general(
        wout_ref[...], col, (((0,), (0,)), ((), ())),
        preferred_element_type=jnp.float32)                  # (C, HW)
    o_ref[0] = (jnp.maximum(acc * os_ref[...] + ob_ref[...], 0.0)
                + xb.astype(jnp.float32))


def rebuild_conv_out(xflat, wrp, cross, wout, oscale, obias, H, W):
    B, C, HW = xflat.shape
    K = wrp.shape[1]
    Kall, IC = cross.shape[1], cross.shape[2]
    kern = functools.partial(_rebuild_out_kernel, H=H, W=W, K=K)
    return pl.pallas_call(
        kern,
        out_shape=jax.ShapeDtypeStruct((B, C, HW), jnp.float32),
        grid=(B,),
        in_specs=[
            pl.BlockSpec((1, C, HW), lambda b: (b, 0, 0)),
            pl.BlockSpec((C, K), lambda b: (0, 0)),
            pl.BlockSpec((1, Kall, IC), lambda b: (b, 0, 0)),
            pl.BlockSpec((9 * IC, C), lambda b: (0, 0)),
            pl.BlockSpec((C, 1), lambda b: (0, 0)),
            pl.BlockSpec((C, 1), lambda b: (0, 0)),
        ],
        out_specs=pl.BlockSpec((1, C, HW), lambda b: (b, 0, 0)),
        scratch_shapes=[pltpu.VMEM((9 * IC, HW), jnp.float32)],
        compiler_params=_compiler_params(),
    )(xflat, wrp, cross, wout, oscale, obias)


# ---------------------------------------------------------------------------
# Deterministic synthetic parameters (GFR.__init__ shapes, coord=False).
# BN stats are folded in eval mode: scale = gamma/sqrt(var+eps),
# bias = beta - mean*scale.  3x3 weights are stored tap-major as
# (9*Cin, Cout) so each conv is a single deep-contraction matmul.
# ---------------------------------------------------------------------------
def init_params(key, channels, inter_channel, n_class, base_per_class):
    base = base_per_class * n_class
    eps = 1e-5
    p = {'reduce_w': [], 'reduce_scale': [], 'reduce_bias': [],
         'project_w': [], 'reproject_w': [],
         'out_w': [], 'out_scale': [], 'out_bias': []}
    for i, c in enumerate(channels):
        key, *ks = jax.random.split(key, 13)
        # conv_reduce: 3x3, c -> inter_channel, BN + ReLU
        p['reduce_w'].append(
            (0.1 * jax.random.normal(ks[0], (9 * c, inter_channel), jnp.float32)
             ).astype(jnp.bfloat16))
        gamma = 1.0 + 0.1 * jax.random.normal(ks[1], (inter_channel,), jnp.float32)
        beta = 0.1 * jax.random.normal(ks[2], (inter_channel,), jnp.float32)
        mean = 0.1 * jax.random.normal(ks[3], (inter_channel,), jnp.float32)
        var = 1.0 + 0.1 * jnp.abs(jax.random.normal(ks[4], (inter_channel,), jnp.float32))
        scale = gamma * jax.lax.rsqrt(var + eps)
        p['reduce_scale'].append(scale[:, None])
        p['reduce_bias'].append((beta - mean * scale)[:, None])
        # conv_project: 1x1, c -> base (no BN / ReLU / bias)
        p['project_w'].append(
            (0.1 * jax.random.normal(ks[5], (c, base), jnp.float32)).astype(jnp.bfloat16))
        # conv_reproject: 1x1, c -> (i+1)*base (no BN / ReLU / bias)
        p['reproject_w'].append(
            (0.1 * jax.random.normal(ks[6], (c, (i + 1) * base), jnp.float32)
             ).astype(jnp.bfloat16))
        # conv_out: 3x3, inter_channel -> c, BN + ReLU
        p['out_w'].append(
            (0.1 * jax.random.normal(ks[7], (9 * inter_channel, c), jnp.float32)
             ).astype(jnp.bfloat16))
        gamma2 = 1.0 + 0.1 * jax.random.normal(ks[8], (c,), jnp.float32)
        beta2 = 0.1 * jax.random.normal(ks[9], (c,), jnp.float32)
        mean2 = 0.1 * jax.random.normal(ks[10], (c,), jnp.float32)
        var2 = 1.0 + 0.1 * jnp.abs(jax.random.normal(ks[11], (c,), jnp.float32))
        scale2 = gamma2 * jax.lax.rsqrt(var2 + eps)
        p['out_scale'].append(scale2[:, None])
        p['out_bias'].append((beta2 - mean2 * scale2)[:, None])
    return p


# ---------------------------------------------------------------------------
# GFR forward (aux=False, coord=False); inputs/outputs in NCHW like PyTorch.
# ---------------------------------------------------------------------------
def gfr_forward(features_nchw, params, inter_channel, n_class, base_per_class):
    base = base_per_class * n_class

    # Features pre-cast to bf16 and flattened (no HBM padding copy).
    shapes = [f.shape for f in features_nchw]
    xflats = [f.astype(jnp.bfloat16).reshape(f.shape[0], f.shape[1], -1)
              for f in features_nchw]

    # Stage 1: fused reduce + project + spatial softmax + basis per level.
    auxs, bases = [], []
    for i, xf in enumerate(xflats):
        B, C, H, W = shapes[i]
        attmap, basis = reduce_project_basis(
            xf, params['reduce_w'][i], params['reduce_scale'][i],
            params['reduce_bias'][i], params['project_w'][i], H, W)
        # aux (aux=False branch): attMap.view(b, n_class, base/n_class, h, w)
        auxs.append(attmap.reshape(B, n_class, base // n_class, H, W))
        bases.append(basis)                                  # (B, base, IC)
    cross = jnp.concatenate(bases, axis=1)                   # (B, L*base, IC)

    # Stage 2: fused reproject + softmax + rebuild + conv_out + residual.
    # Full `cross` is passed; each kernel consumes only its first K rows.
    outs = []
    for i, xf in enumerate(xflats):
        B, C, H, W = shapes[i]
        o = rebuild_conv_out(xf, params['reproject_w'][i], cross,
                             params['out_w'][i], params['out_scale'][i],
                             params['out_bias'][i], H, W)
        outs.append(o.reshape(B, C, H, W))
    return outs, auxs


if __name__ == "__main__":
    key = jax.random.PRNGKey(0)
    channels = [4, 8]
    inter_channel = 16
    n_class = 2
    base_per_class = 2          # GFR(base=2) -> self.base = 4

    k1, k2, kp = jax.random.split(key, 3)
    features = [
        jax.random.normal(k1, (2, 4, 16, 16), jnp.float32),   # level 0: NCHW
        jax.random.normal(k2, (2, 8, 8, 8), jnp.float32),     # level 1: NCHW
    ]
    params = init_params(kp, channels, inter_channel, n_class, base_per_class)

    outs, auxs = gfr_forward(features, params, inter_channel, n_class, base_per_class)
    for arr in outs + auxs:
        jax.block_until_ready(arr)

    assert outs[0].shape == (2, 4, 16, 16) and outs[1].shape == (2, 8, 8, 8)
    assert auxs[0].shape == (2, 2, 2, 16, 16) and auxs[1].shape == (2, 2, 2, 8, 8)
    assert all(bool(jnp.all(jnp.isfinite(a))) for a in outs + auxs)
    print("KERNEL_OK")
</pallas_src>

<mosaic_0001>
module attributes {stable_mosaic.version = 11 : i64} {
  func.func @_reduce_project_basis_kernel(%arg0: i32, %arg1: memref<1x4x256xbf16, #tpu.memory_space<vmem>>, %arg2: memref<36x16xbf16, #tpu.memory_space<vmem>>, %arg3: memref<16x1xf32, #tpu.memory_space<vmem>>, %arg4: memref<16x1xf32, #tpu.memory_space<vmem>>, %arg5: memref<4x4xbf16, #tpu.memory_space<vmem>>, %arg6: memref<1x4x256xf32, #tpu.memory_space<vmem>>, %arg7: memref<1x4x16xf32, #tpu.memory_space<vmem>>, %arg8: memref<36x256xf32, #tpu.memory_space<vmem>>) attributes {dimension_semantics = [#tpu.dimension_semantics<parallel>], iteration_bounds = array<i64: 2>, scalar_prefetch = 0 : i64, scratch_operands = 1 : i64, tpu.core_type = #tpu.core_type<tc>, window_params = [{transform_indices = @transform_0, window_bounds = array<i64: 1, 4, 256>}, {pipeline_mode = #tpu.pipeline_mode<synchronous>, transform_indices = @transform_1, window_bounds = array<i64: 36, 16>}, {pipeline_mode = #tpu.pipeline_mode<synchronous>, transform_indices = @transform_2, window_bounds = array<i64: 16, 1>}, {pipeline_mode = #tpu.pipeline_mode<synchronous>, transform_indices = @transform_3, window_bounds = array<i64: 16, 1>}, {pipeline_mode = #tpu.pipeline_mode<synchronous>, transform_indices = @transform_4, window_bounds = array<i64: 4, 4>}, {transform_indices = @transform_5, window_bounds = array<i64: 1, 4, 256>}, {transform_indices = @transform_6, window_bounds = array<i64: 1, 4, 16>}]} {
    %c0 = arith.constant 0 : index
    %c0_0 = arith.constant 0 : index
    %c0_1 = arith.constant 0 : index
    %0 = vector.load %arg1[%c0, %c0_0, %c0_1] : memref<1x4x256xbf16, #tpu.memory_space<vmem>>, vector<1x4x256xbf16>
    %1 = vector.shape_cast %0 : vector<1x4x256xbf16> to vector<4x256xbf16>
    %2 = arith.extf %1 : vector<4x256xbf16> to vector<4x256xf32>
    %3 = tpu.iota {dimensions = array<i32: 1>} : vector<1x256xi32>
    %c16_i32 = arith.constant 16 : i32
    %c0_i32 = arith.constant 0 : i32
    %4 = arith.cmpi eq, %c16_i32, %c0_i32 : i32
    %c1_i32 = arith.constant 1 : i32
    %5 = arith.select %4, %c1_i32, %c16_i32 : i32
    %6 = vector.broadcast %5 : i32 to vector<1x256xi32>
    %7 = arith.remsi %3, %6 : vector<1x256xi32>
    %c0_i32_2 = arith.constant 0 : i32
    %8 = vector.broadcast %c0_i32_2 : i32 to vector<1x256xi32>
    %9 = arith.cmpi ne, %7, %8 : vector<1x256xi32>
    %c0_i32_3 = arith.constant 0 : i32
    %10 = vector.broadcast %c0_i32_3 : i32 to vector<1x256xi32>
    %11 = arith.cmpi slt, %7, %10 : vector<1x256xi32>
    %c0_i32_4 = arith.constant 0 : i32
    %12 = arith.cmpi slt, %5, %c0_i32_4 : i32
    %13 = vector.broadcast %12 : i1 to vector<1x256xi1>
    %14 = vector.broadcast %13 : vector<1x256xi1> to vector<1x256xi1>
    %15 = arith.xori %11, %14 : vector<1x256xi1>
    %16 = arith.andi %15, %9 : vector<1x256xi1>
    %17 = vector.broadcast %5 : i32 to vector<1x256xi32>
    %18 = arith.addi %7, %17 : vector<1x256xi32>
    %19 = arith.select %16, %18, %7 : vector<1x256xi1>, vector<1x256xi32>
    %c17_i32 = arith.constant 17 : i32
    %20 = tpu.dynamic_rotate %2 by %c17_i32 dim 1 : vector<4x256xf32>, i32 -> vector<4x256xf32>
    %c1_i32_5 = arith.constant 1 : i32
    %21 = vector.broadcast %c1_i32_5 : i32 to vector<1x256xi32>
    %22 = arith.cmpi sge, %19, %21 : vector<1x256xi32>
    %c16_i32_6 = arith.constant 16 : i32
    %23 = vector.broadcast %c16_i32_6 : i32 to vector<1x256xi32>
    %24 = arith.cmpi sge, %3, %23 : vector<1x256xi32>
    %25 = arith.andi %22, %24 : vector<1x256xi1>
    %cst = arith.constant 0.000000e+00 : f32
    %26 = vector.shape_cast %25 : vector<1x256xi1> to vector<1x256xi1>
    %27 = vector.broadcast %26 : vector<1x256xi1> to vector<4x256xi1>
    %28 = vector.broadcast %cst : f32 to vector<4x256xf32>
    %29 = arith.select %27, %20, %28 : vector<4x256xi1>, vector<4x256xf32>
    %c0_7 = arith.constant 0 : index
    %c0_8 = arith.constant 0 : index
    %30 = vector.load %arg8[%c0_7, %c0_8] : memref<36x256xf32, #tpu.memory_space<vmem>>, vector<4x256xf32>
    tpu.vector_store %arg8[%c0_7, %c0_8], %29 {strides = array<i32>} : memref<36x256xf32, #tpu.memory_space<vmem>>, vector<4x256xf32>,
    %c16_i32_9 = arith.constant 16 : i32
    %31 = tpu.dynamic_rotate %2 by %c16_i32_9 dim 1 : vector<4x256xf32>, i32 -> vector<4x256xf32>
    %c16_i32_10 = arith.constant 16 : i32
    %32 = vector.broadcast %c16_i32_10 : i32 to vector<1x256xi32>
    %33 = arith.cmpi sge, %3, %32 : vector<1x256xi32>
    %cst_11 = arith.constant 0.000000e+00 : f32
    %34 = vector.shape_cast %33 : vector<1x256xi1> to vector<1x256xi1>
    %35 = vector.broadcast %34 : vector<1x256xi1> to vector<4x256xi1>
    %36 = vector.broadcast %cst_11 : f32 to vector<4x256xf32>
    %37 = arith.select %35, %31, %36 : vector<4x256xi1>, vector<4x256xf32>
    %c4 = arith.constant 4 : index
    %c0_12 = arith.constant 0 : index
    %38 = vector.load %arg8[%c4, %c0_12] : memref<36x256xf32, #tpu.memory_space<vmem>>, vector<4x256xf32>
    tpu.vector_store %arg8[%c4, %c0_12], %37 {strides = array<i32>} : memref<36x256xf32, #tpu.memory_space<vmem>>, vector<4x256xf32>,
    %c15_i32 = arith.constant 15 : i32
    %39 = tpu.dynamic_rotate %2 by %c15_i32 dim 1 : vector<4x256xf32>, i32 -> vector<4x256xf32>
    %c14_i32 = arith.constant 14 : i32
    %40 = vector.broadcast %c14_i32 : i32 to vector<1x256xi32>
    %41 = arith.cmpi sle, %19, %40 : vector<1x256xi32>
    %c16_i32_13 = arith.constant 16 : i32
    %42 = vector.broadcast %c16_i32_13 : i32 to vector<1x256xi32>
    %43 = arith.cmpi sge, %3, %42 : vector<1x256xi32>
    %44 = arith.andi %41, %43 : vector<1x256xi1>
    %cst_14 = arith.constant 0.000000e+00 : f32
    %45 = vector.shape_cast %44 : vector<1x256xi1> to vector<1x256xi1>
    %46 = vector.broadcast %45 : vector<1x256xi1> to vector<4x256xi1>
    %47 = vector.broadcast %cst_14 : f32 to vector<4x256xf32>
    %48 = arith.select %46, %39, %47 : vector<4x256xi1>, vector<4x256xf32>
    %c8 = arith.constant 8 : index
    %c0_15 = arith.constant 0 : index
    %49 = vector.load %arg8[%c8, %c0_15] : memref<36x256xf32, #tpu.memory_space<vmem>>, vector<4x256xf32>
    tpu.vector_store %arg8[%c8, %c0_15], %48 {strides = array<i32>} : memref<36x256xf32, #tpu.memory_space<vmem>>, vector<4x256xf32>,
    %c1_i32_16 = arith.constant 1 : i32
    %50 = tpu.dynamic_rotate %2 by %c1_i32_16 dim 1 : vector<4x256xf32>, i32 -> vector<4x256xf32>
    %c1_i32_17 = arith.constant 1 : i32
    %51 = vector.broadcast %c1_i32_17 : i32 to vector<1x256xi32>
    %52 = arith.cmpi sge, %19, %51 : vector<1x256xi32>
    %cst_18 = arith.constant 0.000000e+00 : f32
    %53 = vector.shape_cast %52 : vector<1x256xi1> to vector<1x256xi1>
    %54 = vector.broadcast %53 : vector<1x256xi1> to vector<4x256xi1>
    %55 = vector.broadcast %cst_18 : f32 to vector<4x256xf32>
    %56 = arith.select %54, %50, %55 : vector<4x256xi1>, vector<4x256xf32>
    %c12 = arith.constant 12 : index
    %c0_19 = arith.constant 0 : index
    %57 = vector.load %arg8[%c12, %c0_19] : memref<36x256xf32, #tpu.memory_space<vmem>>, vector<4x256xf32>
    tpu.vector_store %arg8[%c12, %c0_19], %56 {strides = array<i32>} : memref<36x256xf32, #tpu.memory_space<vmem>>, vector<4x256xf32>,
    %c16 = arith.constant 16 : index
    %c0_20 = arith.constant 0 : index
    %58 = vector.load %arg8[%c16, %c0_20] : memref<36x256xf32, #tpu.memory_space<vmem>>, vector<4x256xf32>
    tpu.vector_store %arg8[%c16, %c0_20], %2 {strides = array<i32>} : memref<36x256xf32, #tpu.memory_space<vmem>>, vector<4x256xf32>,
    %c255_i32 = arith.constant 255 : i32
    %59 = tpu.dynamic_rotate %2 by %c255_i32 dim 1 : vector<4x256xf32>, i32 -> vector<4x256xf32>
    %c14_i32_21 = arith.constant 14 : i32
    %60 = vector.broadcast %c14_i32_21 : i32 to vector<1x256xi32>
    %61 = arith.cmpi sle, %19, %60 : vector<1x256xi32>
    %cst_22 = arith.constant 0.000000e+00 : f32
    %62 = vector.shape_cast %61 : vector<1x256xi1> to vector<1x256xi1>
    %63 = vector.broadcast %62 : vector<1x256xi1> to vector<4x256xi1>
    %64 = vector.broadcast %cst_22 : f32 to vector<4x256xf32>
    %65 = arith.select %63, %59, %64 : vector<4x256xi1>, vector<4x256xf32>
    %c20 = arith.constant 20 : index
    %c0_23 = arith.constant 0 : index
    %66 = vector.load %arg8[%c20, %c0_23] : memref<36x256xf32, #tpu.memory_space<vmem>>, vector<4x256xf32>
    tpu.vector_store %arg8[%c20, %c0_23], %65 {strides = array<i32>} : memref<36x256xf32, #tpu.memory_space<vmem>>, vector<4x256xf32>,
    %c241_i32 = arith.constant 241 : i32
    %67 = tpu.dynamic_rotate %2 by %c241_i32 dim 1 : vector<4x256xf32>, i32 -> vector<4x256xf32>
    %c1_i32_24 = arith.constant 1 : i32
    %68 = vector.broadcast %c1_i32_24 : i32 to vector<1x256xi32>
    %69 = arith.cmpi sge, %19, %68 : vector<1x256xi32>
    %c240_i32 = arith.constant 240 : i32
    %70 = vector.broadcast %c240_i32 : i32 to vector<1x256xi32>
    %71 = arith.cmpi slt, %3, %70 : vector<1x256xi32>
    %72 = arith.andi %69, %71 : vector<1x256xi1>
    %cst_25 = arith.constant 0.000000e+00 : f32
    %73 = vector.shape_cast %72 : vector<1x256xi1> to vector<1x256xi1>
    %74 = vector.broadcast %73 : vector<1x256xi1> to vector<4x256xi1>
    %75 = vector.broadcast %cst_25 : f32 to vector<4x256xf32>
    %76 = arith.select %74, %67, %75 : vector<4x256xi1>, vector<4x256xf32>
    %c24 = arith.constant 24 : index
    %c0_26 = arith.constant 0 : index
    %77 = vector.load %arg8[%c24, %c0_26] : memref<36x256xf32, #tpu.memory_space<vmem>>, vector<4x256xf32>
    tpu.vector_store %arg8[%c24, %c0_26], %76 {strides = array<i32>} : memref<36x256xf32, #tpu.memory_space<vmem>>, vector<4x256xf32>,
    %c240_i32_27 = arith.constant 240 : i32
    %78 = tpu.dynamic_rotate %2 by %c240_i32_27 dim 1 : vector<4x256xf32>, i32 -> vector<4x256xf32>
    %c240_i32_28 = arith.constant 240 : i32
    %79 = vector.broadcast %c240_i32_28 : i32 to vector<1x256xi32>
    %80 = arith.cmpi slt, %3, %79 : vector<1x256xi32>
    %cst_29 = arith.constant 0.000000e+00 : f32
    %81 = vector.shape_cast %80 : vector<1x256xi1> to vector<1x256xi1>
    %82 = vector.broadcast %81 : vector<1x256xi1> to vector<4x256xi1>
    %83 = vector.broadcast %cst_29 : f32 to vector<4x256xf32>
    %84 = arith.select %82, %78, %83 : vector<4x256xi1>, vector<4x256xf32>
    %c28 = arith.constant 28 : index
    %c0_30 = arith.constant 0 : index
    %85 = vector.load %arg8[%c28, %c0_30] : memref<36x256xf32, #tpu.memory_space<vmem>>, vector<4x256xf32>
    tpu.vector_store %arg8[%c28, %c0_30], %84 {strides = array<i32>} : memref<36x256xf32, #tpu.memory_space<vmem>>, vector<4x256xf32>,
    %c239_i32 = arith.constant 239 : i32
    %86 = tpu.dynamic_rotate %2 by %c239_i32 dim 1 : vector<4x256xf32>, i32 -> vector<4x256xf32>
    %c14_i32_31 = arith.constant 14 : i32
    %87 = vector.broadcast %c14_i32_31 : i32 to vector<1x256xi32>
    %88 = arith.cmpi sle, %19, %87 : vector<1x256xi32>
    %c240_i32_32 = arith.constant 240 : i32
    %89 = vector.broadcast %c240_i32_32 : i32 to vector<1x256xi32>
    %90 = arith.cmpi slt, %3, %89 : vector<1x256xi32>
    %91 = arith.andi %88, %90 : vector<1x256xi1>
    %cst_33 = arith.constant 0.000000e+00 : f32
    %92 = vector.shape_cast %91 : vector<1x256xi1> to vector<1x256xi1>
    %93 = vector.broadcast %92 : vector<1x256xi1> to vector<4x256xi1>
    %94 = vector.broadcast %cst_33 : f32 to vector<4x256xf32>
    %95 = arith.select %93, %86, %94 : vector<4x256xi1>, vector<4x256xf32>
    %c32 = arith.constant 32 : index
    %c0_34 = arith.constant 0 : index
    %96 = vector.load %arg8[%c32, %c0_34] : memref<36x256xf32, #tpu.memory_space<vmem>>, vector<4x256xf32>
    tpu.vector_store %arg8[%c32, %c0_34], %95 {strides = array<i32>} : memref<36x256xf32, #tpu.memory_space<vmem>>, vector<4x256xf32>,
    %c0_35 = arith.constant 0 : index
    %c0_36 = arith.constant 0 : index
    %97 = vector.load %arg8[%c0_35, %c0_36] : memref<36x256xf32, #tpu.memory_space<vmem>>, vector<36x256xf32>
    %98 = arith.truncf %97 : vector<36x256xf32> to vector<36x256xbf16>
    %c0_37 = arith.constant 0 : index
    %c0_38 = arith.constant 0 : index
    %99 = vector.load %arg2[%c0_37, %c0_38] : memref<36x16xbf16, #tpu.memory_space<vmem>>, vector<36x16xbf16>
    %cst_39 = arith.constant dense<0.000000e+00> : vector<16x256xf32>
    %100 = tpu.matmul %99, %98, %cst_39 {dimension_numbers = #tpu.dot_dimension_numbers<[0], [0], [1], [1], [0, 1, 1, 1], [], []>} : vector<36x16xbf16>, vector<36x256xbf16>, vector<16x256xf32> -> vector<16x256xf32>
    %c0_40 = arith.constant 0 : index
    %c0_41 = arith.constant 0 : index
    %101 = vector.load %arg3[%c0_40, %c0_41] : memref<16x1xf32, #tpu.memory_space<vmem>>, vector<16x1xf32>
    %102 = vector.broadcast %101 : vector<16x1xf32> to vector<16x256xf32>
    %103 = arith.mulf %100, %102 : vector<16x256xf32>
    %c0_42 = arith.constant 0 : index
    %c0_43 = arith.constant 0 : index
    %104 = vector.load %arg4[%c0_42, %c0_43] : memref<16x1xf32, #tpu.memory_space<vmem>>, vector<16x1xf32>
    %105 = vector.broadcast %104 : vector<16x1xf32> to vector<16x256xf32>
    %106 = arith.addf %103, %105 : vector<16x256xf32>
    %cst_44 = arith.constant 0.000000e+00 : f32
    %107 = vector.broadcast %cst_44 : f32 to vector<16x256xf32>
    %108 = arith.maximumf %106, %107 : vector<16x256xf32>
    %c0_45 = arith.constant 0 : index
    %c0_46 = arith.constant 0 : index
    %109 = vector.load %arg5[%c0_45, %c0_46] : memref<4x4xbf16, #tpu.memory_space<vmem>>, vector<4x4xbf16>
    %cst_47 = arith.constant dense<0.000000e+00> : vector<4x256xf32>
    %110 = tpu.matmul %109, %1, %cst_47 {dimension_numbers = #tpu.dot_dimension_numbers<[0], [0], [1], [1], [0, 1, 1, 1], [], []>} : vector<4x4xbf16>, vector<4x256xbf16>, vector<4x256xf32> -> vector<4x256xf32>
    %c0_48 = arith.constant 0 : index
    %c0_49 = arith.constant 0 : index
    %c0_50 = arith.constant 0 : index
    %111 = vector.load %arg6[%c0_48, %c0_49, %c0_50] : memref<1x4x256xf32, #tpu.memory_space<vmem>>, vector<1x4x256xf32>
    %112 = vector.shape_cast %111 : vector<1x4x256xf32> to vector<4x256xf32>
    %113 = vector.shape_cast %110 : vector<4x256xf32> to vector<1x4x256xf32>
    tpu.vector_store %arg6[%c0_48, %c0_49, %c0_50], %113 {strides = array<i32>} : memref<1x4x256xf32, #tpu.memory_space<vmem>>, vector<1x4x256xf32>,
    %cst_51 = arith.constant dense<0xFF800000> : vector<4xf32>
    %114 = vector.multi_reduction <maximumf>, %110, %cst_51 [1] : vector<4x256xf32> to vector<4xf32>
    %115 = vector.shape_cast %114 : vector<4xf32> to vector<4x1xf32>
    %116 = vector.broadcast %115 : vector<4x1xf32> to vector<4x256xf32>
    %117 = arith.subf %110, %116 : vector<4x256xf32>
    %118 = math.exp %117 : vector<4x256xf32>
    %cst_52 = arith.constant dense<0.000000e+00> : vector<4xf32>
    %119 = vector.multi_reduction <add>, %118, %cst_52 [1] : vector<4x256xf32> to vector<4xf32>
    %120 = vector.shape_cast %119 : vector<4xf32> to vector<4x1xf32>
    %121 = tpu.reciprocal %120 {approx = true} : vector<4x1xf32> -> vector<4x1xf32>
    %122 = vector.broadcast %121 : vector<4x1xf32> to vector<4x256xf32>
    %123 = arith.mulf %118, %122 : vector<4x256xf32>
    %124 = arith.truncf %123 : vector<4x256xf32> to vector<4x256xbf16>
    %125 = arith.truncf %108 : vector<16x256xf32> to vector<16x256xbf16>
    %cst_53 = arith.constant dense<0.000000e+00> : vector<4x16xf32>
    %126 = tpu.matmul %124, %125, %cst_53 {dimension_numbers = #tpu.dot_dimension_numbers<[1], [1], [0], [0], [0, 0, 1, 0], [], []>} : vector<4x256xbf16>, vector<16x256xbf16>, vector<4x16xf32> -> vector<4x16xf32>
    %c0_54 = arith.constant 0 : index
    %c0_55 = arith.constant 0 : index
    %c0_56 = arith.constant 0 : index
    %127 = vector.load %arg7[%c0_54, %c0_55, %c0_56] : memref<1x4x16xf32, #tpu.memory_space<vmem>>, vector<1x4x16xf32>
    %128 = vector.shape_cast %127 : vector<1x4x16xf32> to vector<4x16xf32>
    %129 = vector.shape_cast %126 : vector<4x16xf32> to vector<1x4x16xf32>
    tpu.vector_store %arg7[%c0_54, %c0_55, %c0_56], %129 {strides = array<i32>} : memref<1x4x16xf32, #tpu.memory_space<vmem>>, vector<1x4x16xf32>,
    return
  }
  func.func @transform_0(%arg0: i32) -> (i32, i32, i32) {
    %c0_i32 = arith.constant 0 : i32
    %c0_i32_0 = arith.constant 0 : i32
    %c0_i32_1 = arith.constant 0 : i32
    return %arg0, %c0_i32, %c0_i32_0 : i32, i32, i32
  }
  func.func @transform_1(%arg0: i32) -> (i32, i32) {
    %c0_i32 = arith.constant 0 : i32
    %c0_i32_0 = arith.constant 0 : i32
    %c0_i32_1 = arith.constant 0 : i32
    return %c0_i32, %c0_i32_0 : i32, i32
  }
  func.func @transform_2(%arg0: i32) -> (i32, i32) {
    %c0_i32 = arith.constant 0 : i32
    %c0_i32_0 = arith.constant 0 : i32
    %c0_i32_1 = arith.constant 0 : i32
    return %c0_i32, %c0_i32_0 : i32, i32
  }
  func.func @transform_3(%arg0: i32) -> (i32, i32) {
    %c0_i32 = arith.constant 0 : i32
    %c0_i32_0 = arith.constant 0 : i32
    %c0_i32_1 = arith.constant 0 : i32
    return %c0_i32, %c0_i32_0 : i32, i32
  }
  func.func @transform_4(%arg0: i32) -> (i32, i32) {
    %c0_i32 = arith.constant 0 : i32
    %c0_i32_0 = arith.constant 0 : i32
    %c0_i32_1 = arith.constant 0 : i32
    return %c0_i32, %c0_i32_0 : i32, i32
  }
  func.func @transform_5(%arg0: i32) -> (i32, i32, i32) {
    %c0_i32 = arith.constant 0 : i32
    %c0_i32_0 = arith.constant 0 : i32
    %c0_i32_1 = arith.constant 0 : i32
    return %arg0, %c0_i32, %c0_i32_0 : i32, i32, i32
  }
  func.func @transform_6(%arg0: i32) -> (i32, i32, i32) {
    %c0_i32 = arith.constant 0 : i32
    %c0_i32_0 = arith.constant 0 : i32
    %c0_i32_1 = arith.constant 0 : i32
    return %arg0, %c0_i32, %c0_i32_0 : i32, i32, i32
  }
}

</mosaic_0001>

<llo_original>
// kernel: tpu_custom_call.1
$region0: #{tpu_custom_call.1}
  #allocation0 [shape = 'u32[]', space=smem, size = 0x4, offset = 0x4, fixed_abs, tag = 'smem constant byte address 0x4 - core index']
  #allocation1 [shape = 'u32[144,128]{1,0:T(1,128)}', space=vmem, size = 0x12000, scoped, tag = 'internal scratch']
  #allocation2 [shape = 'f32[36,256]{1,0:T(8,128)}', space=vmem, size = 0xa000, scoped, tag = 'scratch operand']
  %s0 = inlined_call_operand.vmem [shape: bf16[2,4,256], index: 0, kind: input, shape index: {}]
  %s1 = inlined_call_operand.vmem [shape: bf16[36,16], index: 1, kind: input, shape index: {}]
  %s2 = inlined_call_operand.vmem [shape: f32[16,1], index: 2, kind: input, shape index: {}]
  %s3 = inlined_call_operand.vmem [shape: f32[16,1], index: 3, kind: input, shape index: {}]
  %s4 = inlined_call_operand.vmem [shape: bf16[4,4], index: 4, kind: input, shape index: {}]
  %s5 = inlined_call_operand.hbm [shape: f32[2,4,256], index: 5, kind: output, shape index: {0}]
  %s6 = inlined_call_operand.hbm [shape: f32[2,4,16], index: 6, kind: output, shape index: {1}]
  %7 = xla_tuple %s5, %s6
  %s8 = sld [smem:[#allocation0]]
  $region61: #{tpu_custom_call.1} parent=0
    _
  %s10 = ssub.s32 1, %s8
  %s11 = scalar_select 0, %s10, %s8
  $region1: #{tpu_custom_call.1} parent=0
    #allocation3 [shape = 'u8[8192]{0}', space=vmem, size = 0x2000, scoped, tag = 'output window, operand 0']
    #allocation4 [shape = 's32[2]{0}', space=sflag, size = 0x8, scoped, tag = 'scoped memory for tpu_custom_call.1']
    #allocation5 [shape = 'u8[4096]{0}', space=vmem, size = 0x1000, scoped, tag = 'output window, operand 1']
    #allocation6 [shape = 's32[2]{0}', space=sflag, size = 0x8, scoped, tag = 'scoped memory for tpu_custom_call.1']
    %12 = vsyncpa [#allocation4], 0
    %s13 = scalar_lea.sflag [#allocation4], 1
    %14 = vsyncpa %s13, 0
    %15 = vsyncpa [#allocation6], 0
    %s16 = scalar_lea.sflag [#allocation6], 1
    %17 = vsyncpa %s16, 0
    loop: start=0, step=1, limit=4
    $region2: #{tpu_custom_call.1} parent=1 // loop_pre_header
      _
    $region3: #{tpu_custom_call.1} parent=1 // loop_header
      %s19 = sphi 0, %s23
      %p20 = scmp.ge.s32.totalorder %s19, 4
      %s29 = sphi 0, %s31
      %s32 = sphi 0, %s29
      %s33 = sphi 0, %s32
      %s49 = sphi 0, %s33
      %s53 = sphi 0, %s53
      %s55 = sphi 0, %s53
      %s56 = sphi 0, %s55
      %s70 = sphi 0, %s56
      %s74 = sphi 0, %s74
      %s76 = sphi 0, %s74
      %s77 = sphi 0, %s76
      %s91 = sphi 0, %s77
      %s95 = sphi 0, %s95
      %s97 = sphi 0, %s95
      %s98 = sphi 0, %s97
      %s112 = sphi 0, %s98
      %s116 = sphi 0, %s116
      %s118 = sphi 0, %s116
      %s119 = sphi 0, %s118
      %s133 = sphi 0, %s119
      %s139 = sphi 0, %s141
      %s142 = sphi 0, %s139
      %s143 = sphi 0, %s142
      %s159 = sphi 0, %s143
      %s165 = sphi 0, %s167
      %s168 = sphi 0, %s165
      %s169 = sphi 0, %s168
      %s185 = sphi 0, %s169
    $region4: #{tpu_custom_call.1} parent=1 // loop_header_branch
      %22 = sbr.rel (%p20) target = $region8
    $region5: #{tpu_custom_call.1} parent=1 // loop_body
      %s24 = ssub.s32 %s19, 1
      %s25 = ssub.s32 %s19, 2
      %s26 = sadd.s32 %s19, 1
      %s27 = ssub.s32 %s19, %s26
      %p28 = scmp.eq.s32.totalorder %s27, 0
      %s30 = sadd.s32 %s29, 1
      %s31 = scalar_select %p28, %s29, %s30
      %p34 = pneg %p28
      %p35 = scmp.eq.s32.totalorder %s19, 1
      %p36 = por %p34, %p35
      %p37 = scmp.ne.s32.totalorder %s29, %s32
      %p38 = scmp.eq.s32.totalorder %s19, 0
      %p39 = por %p37, %p38
      %p40 = scmp.ne.s32.totalorder %s29, %s32
      %p41 = scmp.eq.s32.totalorder %s24, 1
      %p42 = por %p40, %p41
      %p43 = scmp.ne.s32.totalorder %s32, %s33
      %p44 = scmp.eq.s32.totalorder %s24, 0
      %p45 = por %p43, %p44
      %p46 = scmp.ne.s32.totalorder %s32, %s33
      %p47 = scmp.eq.s32.totalorder %s25, 1
      %p48 = por %p46, %p47
      %p50 = scmp.ne.s32.totalorder %s33, %s49
      %p51 = scmp.eq.s32.totalorder %s25, 0
      %p52 = por %p50, %p51
      %s54 = sadd.s32 %s53, 1
      %p57 = scmp.eq.s32.totalorder %s19, 1
      %p58 = scmp.ne.s32.totalorder %s53, %s55
      %p59 = scmp.eq.s32.totalorder %s19, 0
      %p60 = por %p58, %p59
      %p61 = scmp.ne.s32.totalorder %s53, %s55
      %p62 = scmp.eq.s32.totalorder %s24, 1
      %p63 = por %p61, %p62
      %p64 = scmp.ne.s32.totalorder %s55, %s56
      %p65 = scmp.eq.s32.totalorder %s24, 0
      %p66 = por %p64, %p65
      %p67 = scmp.ne.s32.totalorder %s55, %s56
      %p68 = scmp.eq.s32.totalorder %s25, 1
      %p69 = por %p67, %p68
      %p71 = scmp.ne.s32.totalorder %s56, %s70
      %p72 = scmp.eq.s32.totalorder %s25, 0
      %p73 = por %p71, %p72
      %s75 = sadd.s32 %s74, 1
      %p78 = scmp.eq.s32.totalorder %s19, 1
      %p79 = scmp.ne.s32.totalorder %s74, %s76
      %p80 = scmp.eq.s32.totalorder %s19, 0
      %p81 = por %p79, %p80
      %p82 = scmp.ne.s32.totalorder %s74, %s76
      %p83 = scmp.eq.s32.totalorder %s24, 1
      %p84 = por %p82, %p83
      %p85 = scmp.ne.s32.totalorder %s76, %s77
      %p86 = scmp.eq.s32.totalorder %s24, 0
      %p87 = por %p85, %p86
      %p88 = scmp.ne.s32.totalorder %s76, %s77
      %p89 = scmp.eq.s32.totalorder %s25, 1
      %p90 = por %p88, %p89
      %p92 = scmp.ne.s32.totalorder %s77, %s91
      %p93 = scmp.eq.s32.totalorder %s25, 0
      %p94 = por %p92, %p93
      %s96 = sadd.s32 %s95, 1
      %p99 = scmp.eq.s32.totalorder %s19, 1
      %p100 = scmp.ne.s32.totalorder %s95, %s97
      %p101 = scmp.eq.s32.totalorder %s19, 0
      %p102 = por %p100, %p101
      %p103 = scmp.ne.s32.totalorder %s95, %s97
      %p104 = scmp.eq.s32.totalorder %s24, 1
      %p105 = por %p103, %p104
      %p106 = scmp.ne.s32.totalorder %s97, %s98
      %p107 = scmp.eq.s32.totalorder %s24, 0
      %p108 = por %p106, %p107
      %p109 = scmp.ne.s32.totalorder %s97, %s98
      %p110 = scmp.eq.s32.totalorder %s25, 1
      %p111 = por %p109, %p110
      %p113 = scmp.ne.s32.totalorder %s98, %s112
      %p114 = scmp.eq.s32.totalorder %s25, 0
      %p115 = por %p113, %p114
      %s117 = sadd.s32 %s116, 1
      %p120 = scmp.eq.s32.totalorder %s19, 1
      %p121 = scmp.ne.s32.totalorder %s116, %s118
      %p122 = scmp.eq.s32.totalorder %s19, 0
      %p123 = por %p121, %p122
      %p124 = scmp.ne.s32.totalorder %s116, %s118
      %p125 = scmp.eq.s32.totalorder %s24, 1
      %p126 = por %p124, %p125
      %p127 = scmp.ne.s32.totalorder %s118, %s119
      %p128 = scmp.eq.s32.totalorder %s24, 0
      %p129 = por %p127, %p128
      %p130 = scmp.ne.s32.totalorder %s118, %s119
      %p131 = scmp.eq.s32.totalorder %s25, 1
      %p132 = por %p130, %p131
      %p134 = scmp.ne.s32.totalorder %s119, %s133
      %p135 = scmp.eq.s32.totalorder %s25, 0
      %p136 = por %p134, %p135
      %s137 = ssub.s32 %s19, %s26
      %p138 = scmp.eq.s32.totalorder %s137, 0
      %s140 = sadd.s32 %s139, 1
      %s141 = scalar_select %p138, %s139, %s140
      %p144 = pneg %p138
      %p145 = scmp.eq.s32.totalorder %s19, 1
      %p146 = por %p144, %p145
      %p147 = scmp.ne.s32.totalorder %s139, %s142
      %p148 = scmp.eq.s32.totalorder %s19, 0
      %p149 = por %p147, %p148
      %p150 = scmp.ne.s32.totalorder %s139, %s142
      %p151 = scmp.eq.s32.totalorder %s24, 1
      %p152 = por %p150, %p151
      %p153 = scmp.ne.s32.totalorder %s142, %s143
      %p154 = scmp.eq.s32.totalorder %s24, 0
      %p155 = por %p153, %p154
      %p156 = scmp.ne.s32.totalorder %s142, %s143
      %p157 = scmp.eq.s32.totalorder %s25, 1
      %p158 = por %p156, %p157
      %p160 = scmp.ne.s32.totalorder %s143, %s159
      %p161 = scmp.eq.s32.totalorder %s25, 0
      %p162 = por %p160, %p161
      %s163 = ssub.s32 %s19, %s26
      %p164 = scmp.eq.s32.totalorder %s163, 0
      %s166 = sadd.s32 %s165, 1
      %s167 = scalar_select %p164, %s165, %s166
      %p170 = pneg %p164
      %p171 = scmp.eq.s32.totalorder %s19, 1
      %p172 = por %p170, %p171
      %p173 = scmp.ne.s32.totalorder %s165, %s168
      %p174 = scmp.eq.s32.totalorder %s19, 0
      %p175 = por %p173, %p174
      %p176 = scmp.ne.s32.totalorder %s165, %s168
      %p177 = scmp.eq.s32.totalorder %s24, 1
      %p178 = por %p176, %p177
      %p179 = scmp.ne.s32.totalorder %s168, %s169
      %p180 = scmp.eq.s32.totalorder %s24, 0
      %p181 = por %p179, %p180
      %p182 = scmp.ne.s32.totalorder %s168, %s169
      %p183 = scmp.eq.s32.totalorder %s25, 1
      %p184 = por %p182, %p183
      %p186 = scmp.ne.s32.totalorder %s169, %s185
      %p187 = scmp.eq.s32.totalorder %s25, 0
      %p188 = por %p186, %p187
      %p189 = scmp.le.s32.totalorder 1, %s19
      %p190 = scmp.lt.s32.totalorder %s19, 3
      %p191 = pnand %p189, %p190
      %p192 = pneg %p191
      // Predicated region
      $region9: #{tpu_custom_call.1} parent=5 // pred_check
        _
      $region10: #{tpu_custom_call.1} parent=5 // pred_check_branch
        %194 = sbr.rel (%p191) target = $region12
      $region11: #{tpu_custom_call.1} parent=5 // pred_region
        %s195 = ssub.s32 %s19, 1
        // Predicated region
        $region13: #{tpu_custom_call.1} parent=11 // pred_check
          %p196 = pneg %p66
        $region14: #{tpu_custom_call.1} parent=11 // pred_check_branch
          %198 = sbr.rel (%p196) target = $region16
        $region15: #{tpu_custom_call.1} parent=11 // pred_region
          _
        $region16: #{tpu_custom_call.1} parent=11 // pred_fallthru
          _
        // Predicated region
        $region17: #{tpu_custom_call.1} parent=11 // pred_check
          %p199 = pneg %p87
        $region18: #{tpu_custom_call.1} parent=11 // pred_check_branch
          %201 = sbr.rel (%p199) target = $region20
        $region19: #{tpu_custom_call.1} parent=11 // pred_region
          _
        $region20: #{tpu_custom_call.1} parent=11 // pred_fallthru
          _
        // Predicated region
        $region21: #{tpu_custom_call.1} parent=11 // pred_check
          %p202 = pneg %p108
        $region22: #{tpu_custom_call.1} parent=11 // pred_check_branch
          %204 = sbr.rel (%p202) target = $region24
        $region23: #{tpu_custom_call.1} parent=11 // pred_region
          _
        $region24: #{tpu_custom_call.1} parent=11 // pred_fallthru
          _
        // Predicated region
        $region25: #{tpu_custom_call.1} parent=11 // pred_check
          %p205 = pneg %p129
        $region26: #{tpu_custom_call.1} parent=11 // pred_check_branch
          %207 = sbr.rel (%p205) target = $region28
        $region27: #{tpu_custom_call.1} parent=11 // pred_region
          _
        $region28: #{tpu_custom_call.1} parent=11 // pred_fallthru
          _
      $region12: #{tpu_custom_call.1} parent=5 // pred_fallthru
        _
      %p208 = scmp.lt.s32.totalorder %s19, 2
      // Predicated region
      $region29: #{tpu_custom_call.1} parent=5 // pred_check
        %p209 = pneg %p208
      $region30: #{tpu_custom_call.1} parent=5 // pred_check_branch
        %211 = sbr.rel (%p209) target = $region32
      $region31: #{tpu_custom_call.1} parent=5 // pred_region
        // Predicated region
        $region33: #{tpu_custom_call.1} parent=31 // pred_check
          %p212 = pneg %p39
        $region34: #{tpu_custom_call.1} parent=31 // pred_check_branch
          %214 = sbr.rel (%p212) target = $region36
        $region35: #{tpu_custom_call.1} parent=31 // pred_region
          %p215 = scmp.lt.s32.totalorder %s19, 1
          %s216 = scalar_select %p215, %s19, 1
          %s217 = smul.addr %s216, 2
          %s218 = smul.addr %s217, 2
          %s219 = scalar_lea.vmem %s0, %s218
        $region36: #{tpu_custom_call.1} parent=31 // pred_fallthru
          _
      $region32: #{tpu_custom_call.1} parent=5 // pred_fallthru
        _
      %p220 = scmp.le.s32.totalorder 1, %s19
      %p221 = scmp.lt.s32.totalorder %s19, 3
      %p222 = pnand %p220, %p221
      %p223 = pneg %p222
      // Predicated region
      $region37: #{tpu_custom_call.1} parent=5 // pred_check
        _
      $region38: #{tpu_custom_call.1} parent=5 // pred_check_branch
        %225 = sbr.rel (%p222) target = $region40
      $region39: #{tpu_custom_call.1} parent=5 // pred_region
        %s226 = ssub.s32 %s19, 1
        %p227 = scmp.lt.s32.totalorder %s24, 1
        %s228 = scalar_select %p227, %s24, 1
        %s229 = smul.addr %s228, 2
        %s230 = smul.addr %s229, 2
        %s231 = scalar_lea.vmem %s0, %s230
        %p232 = pneg %p45
        %p233 = pneg %p42
        %p234 = pneg %p66
        %p235 = pneg %p63
        %p236 = pneg %p87
        %p237 = pneg %p84
        %p238 = pneg %p108
        %p239 = pneg %p105
        %p240 = pneg %p129
        %p241 = pneg %p126
        %p242 = pneg %p155
        %p243 = pneg %p152
        %s244 = sand.u32 %s142, 1
        %s245 = scalar_lea.sflag [#allocation4], %s244
        %s246 = sand.u32 %s142, 1
        %s247 = smul.addr %s246, 8
        %s248 = scalar_lea.vmem [#allocation3], %s247
        %p249 = pneg %p181
        %p250 = pneg %p178
        %s251 = sand.u32 %s168, 1
        %s252 = scalar_lea.sflag [#allocation6], %s251
        %s253 = sand.u32 %s168, 1
        %s254 = smul.addr %s253, 4
        %s255 = scalar_lea.vmem [#allocation5], %s254
        %p256 = scmp.lt.s32.totalorder %s24, 1
        %s257 = scalar_select %p256, %s24, 1
        %s258 = smul.addr %s257, 2
        %s259 = smul.addr %s258, 2
        %s260 = scalar_lea.vmem %s0, %s259
        %v262 = vld [vmem:[%s260] sm:$0xf]
        %v263 = vunpack.c.l.bf16 %v262
        %v264 = vlaneseq
        %v265 = vand.u32 %v264, 127
        %v266 = vadd.s32 %v265, 128
        %vm267 = vcmp.lt.s32.totalorder %v265, 0
        %v268 = vsub.s32 0, %v265
        %v269 = vsel %vm267, %v268, %v265
        %v270 = vshrl.u32 %v269, 4
        %v271 = vand.u32 %v269, 15
        %v272 = vsub.s32 0, %v271
        %v273 = vsel %vm267, %v272, %v271
        %vm274 = vcmp.lt.s32.totalorder %v266, 0
        %v275 = vsub.s32 0, %v266
        %v276 = vsel %vm274, %v275, %v266
        %v277 = vshrl.u32 %v276, 4
        %v278 = vand.u32 %v276, 15
        %v279 = vsub.s32 0, %v278
        %v280 = vsel %vm274, %v279, %v278
        %vm281 = vcmp.ne.s32.totalorder %v273, 0
        %vm282 = vcmp.ne.s32.totalorder %v280, 0
        %vm283 = vcmp.lt.s32.totalorder %v273, 0
        %vm284 = vcmp.lt.s32.totalorder %v280, 0
        %vm285 = vmand %vm283, %vm281
        %vm286 = vmand %vm284, %vm282
        %v287 = vadd.s32 %v273, 16
        %v288 = vadd.s32 %v280, 16
        %v289 = vsel %vm285, %v287, %v273
        %v290 = vsel %vm286, %v288, %v280
        %v292 = vcombine.high %v263, %v263
        %294 = vrot.lane.b32.xlu0 %v263, 17
        %v295 = vpop.permute.xlu0 %294
        %296 = vrot.lane.b32.xlu0 %v292, 17
        %v297 = vpop.permute.xlu0 %296
        %vm298 = vcmp.lt.s32.totalorder %v265, 17
        %v299 = vsel %vm298, %v295, %v297
        %v300 = vsel %vm298, %v297, %v295
        %vm301 = vcmp.ge.s32.totalorder %v289, 1
        %vm302 = vcmp.ge.s32.totalorder %v290, 1
        %vm303 = vcmp.ge.s32.totalorder %v265, 16
        %vm304 = vcmp.ge.s32.totalorder %v266, 16
        %vm305 = vmand %vm301, %vm303
        %vm306 = vmand %vm302, %vm304
        %v307 = vsel %vm305, 1, 0
        %v308 = vsel %vm306, 1, 0
        %vm309 = vcmp.eq.s32.totalorder %v307, 1
        %vm310 = vcmp.eq.s32.totalorder %v308, 1
        %v311 = vsel %vm309, %v300, 0.0
        %v312 = vsel %vm310, %v299, 0.0
        %313 = vst [vmem:[#allocation2] sm:$0xf] %v311
        %314 = vst [vmem:[#allocation2 + $0x8] sm:$0xf] %v312
        %315 = vrot.lane.b32.xlu0 %v263, 16
        %v316 = vpop.permute.xlu0 %315
        %317 = vrot.lane.b32.xlu0 %v292, 16
        %v318 = vpop.permute.xlu0 %317
        %vm319 = vcmp.lt.s32.totalorder %v265, 16
        %v320 = vsel %vm319, %v316, %v318
        %v321 = vsel %vm319, %v318, %v316
        %v322 = vsel %vm303, 1, 0
        %v323 = vsel %vm304, 1, 0
        %vm324 = vcmp.eq.s32.totalorder %v322, 1
        %vm325 = vcmp.eq.s32.totalorder %v323, 1
        %v326 = vsel %vm324, %v321, 0.0
        %v327 = vsel %vm325, %v320, 0.0
        %v330 = vrot.slane %v326, 4
        %v331 = vrot.slane %v327, 4
        %334 = vst [vmem:[#allocation2] sm:$0xf0] %v330
        %335 = vst [vmem:[#allocation2 + $0x8] sm:$0xf0] %v331
        %336 = vrot.lane.b32.xlu0 %v263, 15
        %v337 = vpop.permute.xlu0 %336
        %338 = vrot.lane.b32.xlu0 %v292, 15
        %v339 = vpop.permute.xlu0 %338
        %vm340 = vcmp.lt.s32.totalorder %v265, 15
        %v341 = vsel %vm340, %v337, %v339
        %v342 = vsel %vm340, %v339, %v337
        %vm343 = vcmp.le.s32.totalorder %v289, 14
        %vm344 = vcmp.le.s32.totalorder %v290, 14
        %vm345 = vmand %vm343, %vm303
        %vm346 = vmand %vm344, %vm304
        %v347 = vsel %vm345, 1, 0
        %v348 = vsel %vm346, 1, 0
        %vm349 = vcmp.eq.s32.totalorder %v347, 1
        %vm350 = vcmp.eq.s32.totalorder %v348, 1
        %v351 = vsel %vm349, %v342, 0.0
        %v352 = vsel %vm350, %v341, 0.0
        %353 = vst [vmem:[#allocation2 + $0x10] sm:$0xf] %v351
        %354 = vst [vmem:[#allocation2 + $0x18] sm:$0xf] %v352
        %355 = vrot.lane.b32.xlu0 %v263, 1
        %v356 = vpop.permute.xlu0 %355
        %357 = vrot.lane.b32.xlu0 %v292, 1
        %v358 = vpop.permute.xlu0 %357
        %vm359 = vcmp.lt.s32.totalorder %v265, 1
        %v360 = vsel %vm359, %v356, %v358
        %v361 = vsel %vm359, %v358, %v356
        %v362 = vsel %vm301, 1, 0
        %v363 = vsel %vm302, 1, 0
        %vm364 = vcmp.eq.s32.totalorder %v362, 1
        %vm365 = vcmp.eq.s32.totalorder %v363, 1
        %v366 = vsel %vm364, %v361, 0.0
        %v367 = vsel %vm365, %v360, 0.0
        %v370 = vrot.slane %v366, 4
        %v371 = vrot.slane %v367, 4
        %374 = vst [vmem:[#allocation2 + $0x10] sm:$0xf0] %v370
        %375 = vst [vmem:[#allocation2 + $0x18] sm:$0xf0] %v371
        %376 = vst [vmem:[#allocation2 + $0x20] sm:$0xf] %v263
        %377 = vst [vmem:[#allocation2 + $0x28] sm:$0xf] %v292
        %378 = vrot.lane.b32.xlu0 %v263, 127
        %v379 = vpop.permute.xlu0 %378
        %380 = vrot.lane.b32.xlu0 %v292, 127
        %v381 = vpop.permute.xlu0 %380
        %vm382 = vcmp.lt.s32.totalorder %v265, 127
        %v383 = vsel %vm382, %v379, %v381
        %v384 = vsel %vm382, %v381, %v379
        %v385 = vsel %vm343, 1, 0
        %v386 = vsel %vm344, 1, 0
        %vm387 = vcmp.eq.s32.totalorder %v385, 1
        %vm388 = vcmp.eq.s32.totalorder %v386, 1
        %v389 = vsel %vm387, %v383, 0.0
        %v390 = vsel %vm388, %v384, 0.0
        %v393 = vrot.slane %v389, 4
        %v394 = vrot.slane %v390, 4
        %397 = vst [vmem:[#allocation2 + $0x20] sm:$0xf0] %v393
        %398 = vst [vmem:[#allocation2 + $0x28] sm:$0xf0] %v394
        %399 = vrot.lane.b32.xlu0 %v263, 113
        %v400 = vpop.permute.xlu0 %399
        %401 = vrot.lane.b32.xlu0 %v292, 113
        %v402 = vpop.permute.xlu0 %401
        %vm403 = vcmp.lt.s32.totalorder %v265, 113
        %v404 = vsel %vm403, %v400, %v402
        %v405 = vsel %vm403, %v402, %v400
        %vm406 = vcmp.lt.s32.totalorder %v265, 240
        %vm407 = vcmp.lt.s32.totalorder %v266, 240
        %vm408 = vmand %vm301, %vm406
        %vm409 = vmand %vm302, %vm407
        %v410 = vsel %vm408, 1, 0
        %v411 = vsel %vm409, 1, 0
        %vm412 = vcmp.eq.s32.totalorder %v410, 1
        %vm413 = vcmp.eq.s32.totalorder %v411, 1
        %v414 = vsel %vm412, %v404, 0.0
        %v415 = vsel %vm413, %v405, 0.0
        %416 = vst [vmem:[#allocation2 + $0x30] sm:$0xf] %v414
        %417 = vst [vmem:[#allocation2 + $0x38] sm:$0xf] %v415
        %418 = vrot.lane.b32.xlu0 %v263, 112
        %v419 = vpop.permute.xlu0 %418
        %420 = vrot.lane.b32.xlu0 %v292, 112
        %v421 = vpop.permute.xlu0 %420
        %vm422 = vcmp.lt.s32.totalorder %v265, 112
        %v423 = vsel %vm422, %v419, %v421
        %v424 = vsel %vm422, %v421, %v419
        %v425 = vsel %vm406, 1, 0
        %v426 = vsel %vm407, 1, 0
        %vm427 = vcmp.eq.s32.totalorder %v425, 1
        %vm428 = vcmp.eq.s32.totalorder %v426, 1
        %v429 = vsel %vm427, %v423, 0.0
        %v430 = vsel %vm428, %v424, 0.0
        %v433 = vrot.slane %v429, 4
        %v434 = vrot.slane %v430, 4
        %437 = vst [vmem:[#allocation2 + $0x30] sm:$0xf0] %v433
        %438 = vst [vmem:[#allocation2 + $0x38] sm:$0xf0] %v434
        %439 = vrot.lane.b32.xlu0 %v263, 111
        %v440 = vpop.permute.xlu0 %439
        %441 = vrot.lane.b32.xlu0 %v292, 111
        %v442 = vpop.permute.xlu0 %441
        %vm443 = vcmp.lt.s32.totalorder %v265, 111
        %v444 = vsel %vm443, %v440, %v442
        %v445 = vsel %vm443, %v442, %v440
        %vm446 = vmand %vm343, %vm406
        %vm447 = vmand %vm344, %vm407
        %v448 = vsel %vm446, 1, 0
        %v449 = vsel %vm447, 1, 0
        %vm450 = vcmp.eq.s32.totalorder %v448, 1
        %vm451 = vcmp.eq.s32.totalorder %v449, 1
        %v452 = vsel %vm450, %v444, 0.0
        %v453 = vsel %vm451, %v445, 0.0
        %454 = vst [vmem:[#allocation2 + $0x40] sm:$0xf] %v452
        %455 = vst [vmem:[#allocation2 + $0x48] sm:$0xf] %v453
        %v456 = vld [vmem:[#allocation2] sm:$0xff]
        %v457 = vld [vmem:[#allocation2 + $0x8] sm:$0xff]
        %v458 = vld [vmem:[#allocation2 + $0x10] sm:$0xff]
        %v459 = vld [vmem:[#allocation2 + $0x18] sm:$0xff]
        %v460 = vld [vmem:[#allocation2 + $0x20] sm:$0xff]
        %v461 = vld [vmem:[#allocation2 + $0x28] sm:$0xff]
        %v462 = vld [vmem:[#allocation2 + $0x30] sm:$0xff]
        %v463 = vld [vmem:[#allocation2 + $0x38] sm:$0xff]
        %v464 = vld [vmem:[#allocation2 + $0x40] sm:$0xf]
        %v465 = vld [vmem:[#allocation2 + $0x48] sm:$0xf]
        %v466 = vpack.c.bf16 %v458, %v456
        %v467 = vpack.c.bf16 %v459, %v457
        %v468 = vpack.c.bf16 %v462, %v460
        %v469 = vpack.c.bf16 %v463, %v461
        %v470 = vpack.c.bf16 %v464, %v464
        %v471 = vpack.c.bf16 %v465, %v465
        %v472 = vld [vmem:[%s1] sm:$0xf]
        %v473 = vld [vmem:[%s1 + $0x4] sm:$0xf]
        %v474 = vld [vmem:[%s1 + $0x8] sm:$0xf]
        %v475 = vld [vmem:[%s1 + $0xc] sm:$0xf]
        %v476 = vld [vmem:[%s1 + $0x10] sm:$0x3]
        %v482 = vunpack.c.l.b16 %v472
        %v483 = vunpack.c.l.b16 %v473
        %v484 = vunpack.c.l.b16 %v474
        %v485 = vunpack.c.l.b16 %v475
        %v486 = vunpack.c.l.b16 %v476
        %v487 = vpack.c.b16 %v483, %v482
        %v488 = vpack.c.b16 %v485, %v484
        %v489 = vpack.c.b16 %v486, %v486
        %493 = vxpose.xlu0.c.b16.start [1/8] %v487, 128
        %494 = vxpose.xlu0.c.b16.cont [2/8] %v488, 128
        %495 = vxpose.xlu0.c.b16.cont [3/8] %v489, 128
        %496 = vxpose.xlu0.c.b16.cont [4/8] 0, 128
        %497 = vxpose.xlu0.c.b16.cont [5/8] 0, 128
        %498 = vxpose.xlu0.c.b16.cont [6/8] 0, 128
        %499 = vxpose.xlu0.c.b16.cont [7/8] 0, 128
        %500 = vxpose.xlu0.c.b16.end [8/8] 0, 128
        %v501 = vpop.trf.xlu0
        %v502 = vpop.trf.xlu0
        %v503 = vpop.trf.xlu0
        %v504 = vpop.trf.xlu0
        %v505 = vpop.trf.xlu0
        %v506 = vpop.trf.xlu0
        %v507 = vpop.trf.xlu0
        %v508 = vpop.trf.xlu0
        %vm509 = vcmask 293888
        %v511 = vsel %vm509, %v501, 0
        %vm513 = vcmask 1041408
        %v515 = vsel %vm513, %v470, 0
        %v518 = vsel %vm513, %v471, 0
        %520 = vmatprep.subr.bf16.mxu0 0
        %521 = vmatpush1.bf16.msra.mxu0 0
        %522 = vmatprep.subr.bf16.mxu0 0
        %523 = vmatpush1.bf16.msra.mxu0 0
        %524 = vmatprep.subr.bf16.mxu0 0
        %525 = vmatpush1.bf16.msra.mxu0 0
        %526 = vmatprep.subr.bf16.mxu0 0
        %527 = vmatpush1.bf16.msra.mxu0 0
        %528 = vmatprep.subr.bf16.mxu0 0
        %529 = vmatpush1.bf16.msra.mxu0 0
        %530 = vmatprep.subr.bf16.mxu0 %v518
        %531 = vmatpush1.bf16.msra.mxu0 %v515
        %532 = vmatprep.subr.bf16.mxu0 %v469
        %533 = vmatpush1.bf16.msra.mxu0 %v468
        %534 = vmatprep.subr.bf16.mxu0 %v467
        %535 = vmatpush1.bf16.msra.mxu0 %v466
        %536 = vmatprep.subr.bf16.mxu0 0
        %537 = vmatpush2.bf16.msra.mxu0 0
        %538 = vmatprep.subr.bf16.mxu0 0
        %539 = vmatpush2.bf16.msra.mxu0 0
        %540 = vmatprep.subr.bf16.mxu0 0
        %541 = vmatpush2.bf16.msra.mxu0 0
        %542 = vmatprep.subr.bf16.mxu0 0
        %543 = vmatpush2.bf16.msra.mxu0 0
        %544 = vmatprep.subr.bf16.mxu0 0
        %545 = vmatpush2.bf16.msra.mxu0 0
        %546 = vmatprep.subr.bf16.mxu0 0
        %547 = vmatpush2.bf16.msra.mxu0 0
        %548 = vmatprep.subr.bf16.mxu0 0
        %549 = vmatpush2.bf16.msra.mxu0 0
        %550 = vmatprep.subr.bf16.mxu0 0
        %551 = vmatpush2.bf16.msra.mxu0 0
        %552 = vmatprep.mubr.bf16.mxu0 0
        %553 = vmatmul.mubr.bf16.gmra.mxu0 %v511
        %v554 = vpop.f32.mrf.mxu0
        %v555 = vadd.f32 0.0, %v554
        %v556 = vpop.f32.mrf.mxu0
        %v557 = vadd.f32 0.0, %v556
        %v558 = vpop.f32.mrf.mxu0
        %v559 = vadd.f32 0.0, %v558
        %v560 = vpop.f32.mrf.mxu0
        %v561 = vadd.f32 0.0, %v560
        %562 = vdwg.mxu0
        %v563 = vld [vmem:[%s2] sm:$0xff]
        %v564 = vld [vmem:[%s2 + $0x8] sm:$0xff]
        %566 = vset.pattern.permute.xlu0 0
        %567 = vperm.xlu0 %566, %v563
        %v568 = vpop.permute.xlu0 %567
        %571 = vset.pattern.permute.xlu0 0
        %572 = vperm.xlu0 %571, %v564
        %v573 = vpop.permute.xlu0 %572
        %v575 = vmul.f32 %v555, %v568
        %v576 = vmul.f32 %v557, %v568
        %v577 = vmul.f32 %v559, %v573
        %v578 = vmul.f32 %v561, %v573
        %v579 = vld [vmem:[%s3] sm:$0xff]
        %v580 = vld [vmem:[%s3 + $0x8] sm:$0xff]
        %582 = vset.pattern.permute.xlu0 0
        %583 = vperm.xlu0 %582, %v579
        %v584 = vpop.permute.xlu0 %583
        %587 = vset.pattern.permute.xlu0 0
        %588 = vperm.xlu0 %587, %v580
        %v589 = vpop.permute.xlu0 %588
        %v591 = vadd.f32 %v575, %v584
        %v592 = vadd.f32 %v576, %v584
        %v593 = vadd.f32 %v577, %v589
        %v594 = vadd.f32 %v578, %v589
        %v595 = vmax.f32 %v591, 0.0
        %v596 = vmax.f32 %v592, 0.0
        %v597 = vmax.f32 %v593, 0.0
        %v598 = vmax.f32 %v594, 0.0
        %v599 = vld [vmem:[%s4] sm:$0x3]
        %600 = vxpose.xlu0.c.b16.start [1/8] %v599, 128
        %601 = vxpose.xlu0.c.b16.cont [2/8] 0, 128
        %602 = vxpose.xlu0.c.b16.cont [3/8] 0, 128
        %603 = vxpose.xlu0.c.b16.cont [4/8] 0, 128
        %604 = vxpose.xlu0.c.b16.cont [5/8] 0, 128
        %605 = vxpose.xlu0.c.b16.cont [6/8] 0, 128
        %606 = vxpose.xlu0.c.b16.cont [7/8] 0, 128
        %607 = vxpose.xlu0.c.b16.end [8/8] 0, 128
        %v608 = vpop.trf.xlu0
        %v609 = vpop.trf.xlu0
        %v610 = vpop.trf.xlu0
        %v611 = vpop.trf.xlu0
        %v612 = vpop.trf.xlu0
        %v613 = vpop.trf.xlu0
        %v614 = vpop.trf.xlu0
        %v615 = vpop.trf.xlu0
        %v618 = vunpack.c.l.s4 1983009808
        %v619 = vunpack.c.0.s8 %v618
        %v620 = vlaneseq
        %v621 = vshrl.u32 %v620, 7
        %v622 = vsub.s32 %v619, %v621
        %v623 = vrot.slane %v262, %v622
        %v624 = vcombine.high %v623, %v623
        %vm625 = vcmask 31744
        %v627 = vsel %vm625, %v608, 0
        %v630 = vsel %vm513, %v623, 0
        %v633 = vsel %vm513, %v624, 0
        %635 = vmatprep.subr.bf16.mxu0 0
        %636 = vmatpush1.bf16.msra.mxu0 0
        %637 = vmatprep.subr.bf16.mxu0 0
        %638 = vmatpush1.bf16.msra.mxu0 0
        %639 = vmatprep.subr.bf16.mxu0 0
        %640 = vmatpush1.bf16.msra.mxu0 0
        %641 = vmatprep.subr.bf16.mxu0 0
        %642 = vmatpush1.bf16.msra.mxu0 0
        %643 = vmatprep.subr.bf16.mxu0 0
        %644 = vmatpush1.bf16.msra.mxu0 0
        %645 = vmatprep.subr.bf16.mxu0 0
        %646 = vmatpush1.bf16.msra.mxu0 0
        %647 = vmatprep.subr.bf16.mxu0 0
        %648 = vmatpush1.bf16.msra.mxu0 0
        %649 = vmatprep.subr.bf16.mxu0 %v633
        %650 = vmatpush1.bf16.msra.mxu0 %v630
        %651 = vmatprep.subr.bf16.mxu0 0
        %652 = vmatpush2.bf16.msra.mxu0 0
        %653 = vmatprep.subr.bf16.mxu0 0
        %654 = vmatpush2.bf16.msra.mxu0 0
        %655 = vmatprep.subr.bf16.mxu0 0
        %656 = vmatpush2.bf16.msra.mxu0 0
        %657 = vmatprep.subr.bf16.mxu0 0
        %658 = vmatpush2.bf16.msra.mxu0 0
        %659 = vmatprep.subr.bf16.mxu0 0
        %660 = vmatpush2.bf16.msra.mxu0 0
        %661 = vmatprep.subr.bf16.mxu0 0
        %662 = vmatpush2.bf16.msra.mxu0 0
        %663 = vmatprep.subr.bf16.mxu0 0
        %664 = vmatpush2.bf16.msra.mxu0 0
        %665 = vmatprep.subr.bf16.mxu0 0
        %666 = vmatpush2.bf16.msra.mxu0 0
        %667 = vmatprep.mubr.bf16.mxu0 0
        %668 = vmatmul.mubr.bf16.gmra.mxu0 %v627
        %v669 = vpop.f32.mrf.mxu0
        %v670 = vadd.f32 0.0, %v669
        %v671 = vpop.f32.mrf.mxu0
        %v672 = vadd.f32 0.0, %v671
        %v673 = vpop.f32.mrf.mxu0
        %v674 = vpop.f32.mrf.mxu0
        %675 = vdwg.mxu0
        %v678 = vcombine.low %v670, %v672
        %680 = vst [vmem:[%s248] sm:$0xff] %v678
        %vm681 = vcmask 1043456
        %v682 = vsel %vm681, %v670, -inf
        %v683 = vsel %vm681, %v672, -inf
        %v684 = vmax.f32 %v682, %v683
        %685 = vmax.xlane.f32.xlu0 %v684
        %v686 = vpop.xlane.xlu0 %685
        %v687 = vsub.f32 %v670, %v686
        %v688 = vsub.f32 %v672, %v686
        %v689 = vmul.f32 %v687, 1.442695
        %v690 = vpow.pop %v689
        %v691 = vmul.f32 %v688, 1.442695
        %v692 = vpow.pop %v691
        %v693 = vsel %vm681, %v690, 0.0
        %v694 = vsel %vm681, %v692, 0.0
        %v695 = vadd.f32 %v693, %v694
        %696 = vadd.xlane.f32.xlu0 %v695
        %v697 = vpop.xlane.xlu0 %696
        %v698 = vrcp.pop %v697
        %v699 = vmul.f32 %v690, %v698
        %v700 = vmul.f32 %v692, %v698
        %v701 = vpack.c.bf16 %v699, %v699
        %v702 = vpack.c.bf16 %v700, %v700
        %v703 = vpack.c.bf16 %v597, %v595
        %v704 = vpack.c.bf16 %v598, %v596
        %705 = vmatprep.subr.bf16.mxu0 0
        %706 = vmatpush1.bf16.xpose.msra.mxu0 0
        %707 = vmatprep.subr.bf16.mxu0 0
        %708 = vmatpush1.bf16.xpose.msra.mxu0 0
        %709 = vmatprep.subr.bf16.mxu0 0
        %710 = vmatpush1.bf16.xpose.msra.mxu0 0
        %711 = vmatprep.subr.bf16.mxu0 0
        %712 = vmatpush1.bf16.xpose.msra.mxu0 0
        %713 = vmatprep.subr.bf16.mxu0 0
        %714 = vmatpush1.bf16.xpose.msra.mxu0 0
        %715 = vmatprep.subr.bf16.mxu0 0
        %716 = vmatpush1.bf16.xpose.msra.mxu0 0
        %717 = vmatprep.subr.bf16.mxu0 0
        %718 = vmatpush1.bf16.xpose.msra.mxu0 0
        %719 = vmatprep.subr.bf16.mxu0 %v704
        %720 = vmatpush1.bf16.xpose.msra.mxu0 %v703
        %721 = vmatprep.subr.bf16.mxu0 0
        %722 = vmatpush2.bf16.xpose.msra.mxu0 0
        %723 = vmatprep.subr.bf16.mxu0 0
        %724 = vmatpush2.bf16.xpose.msra.mxu0 0
        %725 = vmatprep.subr.bf16.mxu0 0
        %726 = vmatpush2.bf16.xpose.msra.mxu0 0
        %727 = vmatprep.subr.bf16.mxu0 0
        %728 = vmatpush2.bf16.xpose.msra.mxu0 0
        %729 = vmatprep.subr.bf16.mxu0 0
        %730 = vmatpush2.bf16.xpose.msra.mxu0 0
        %731 = vmatprep.subr.bf16.mxu0 0
        %732 = vmatpush2.bf16.xpose.msra.mxu0 0
        %733 = vmatprep.subr.bf16.mxu0 0
        %734 = vmatpush2.bf16.xpose.msra.mxu0 0
        %735 = vmatprep.subr.bf16.mxu0 0
        %736 = vmatpush2.bf16.xpose.msra.mxu0 0
        %737 = vmatprep.mubr.bf16.mxu0 %v702
        %738 = vmatmul.mubr.bf16.gmra.mxu0 %v701
        %v739 = vpop.f32.mrf.mxu0
        %v740 = vadd.f32 0.0, %v739
        %v741 = vpop.f32.mrf.mxu0
        %v742 = vpop.f32.mrf.mxu0
        %v743 = vpop.f32.mrf.mxu0
        %744 = vdwg.mxu0
        %vm745 = vcmask 125952
        %746 = vst.msk [vmem:[%s255] sm:$0xf] %vm745, %v740
        %s747 = sand.u32 %s142, 1
        %s748 = scalar_lea.sflag [#allocation4], %s747
        %s749 = sand.u32 %s142, 1
        %s750 = smul.addr %s749, 8
        %s751 = scalar_lea.vmem [#allocation3], %s750
        %s752 = sand.u32 %s168, 1
        %s753 = scalar_lea.sflag [#allocation6], %s752
        %s754 = sand.u32 %s168, 1
        %s755 = smul.addr %s754, 4
        %s756 = scalar_lea.vmem [#allocation5], %s755
        // Predicated region
        $region41: #{tpu_custom_call.1} parent=39 // pred_check
          %p757 = pneg %p152
        $region42: #{tpu_custom_call.1} parent=39 // pred_check_branch
          %759 = sbr.rel (%p757) target = $region44
        $region43: #{tpu_custom_call.1} parent=39 // pred_region
          %s761 = ssub.s32 128, 128
          %762 = vsyncadd %s748, %s761
          %s763 = smul.addr %s24, 2
          %s764 = smul.addr %s763, 64
          %s765 = scalar_lea.hbm %s5, %s764
          %s767 = sshll.u32 %s751, 4
          %s768 = int_to_ptr.vmem [resolvable:$true] %s767
          %770 = dma.vmem_to_hbm [thread:$0]  %s768, 128, %s765, %s748
        $region44: #{tpu_custom_call.1} parent=39 // pred_fallthru
          _
        // Predicated region
        $region45: #{tpu_custom_call.1} parent=39 // pred_check
          %p771 = pneg %p178
        $region46: #{tpu_custom_call.1} parent=39 // pred_check_branch
          %773 = sbr.rel (%p771) target = $region48
        $region47: #{tpu_custom_call.1} parent=39 // pred_region
          %s775 = ssub.s32 64, 64
          %776 = vsyncadd %s753, %s775
          %s777 = smul.addr %s24, 64
          %s778 = scalar_lea.hbm %s6, %s777
          %s780 = sshll.u32 %s756, 4
          %s781 = int_to_ptr.vmem [resolvable:$true] %s780
          %783 = dma.vmem_to_hbm [thread:$0]  %s781, 64, %s778, %s753
        $region48: #{tpu_custom_call.1} parent=39 // pred_fallthru
          _
      $region40: #{tpu_custom_call.1} parent=5 // pred_fallthru
        _
      %p784 = scmp.le.s32.totalorder 2, %s19
      // Predicated region
      $region49: #{tpu_custom_call.1} parent=5 // pred_check
        %p785 = pneg %p784
      $region50: #{tpu_custom_call.1} parent=5 // pred_check_branch
        %787 = sbr.rel (%p785) target = $region52
      $region51: #{tpu_custom_call.1} parent=5 // pred_region
        %s788 = ssub.s32 %s19, 2
        // Predicated region
        $region53: #{tpu_custom_call.1} parent=51 // pred_check
          %p789 = pneg %p158
        $region54: #{tpu_custom_call.1} parent=51 // pred_check_branch
          %791 = sbr.rel (%p789) target = $region56
        $region55: #{tpu_custom_call.1} parent=51 // pred_region
          %s792 = sand.u32 %s143, 1
          %s793 = scalar_lea.sflag [#allocation4], %s792
          %s794 = sand.u32 %s143, 1
          %s795 = smul.addr %s794, 8
          %s796 = scalar_lea.vmem [#allocation3], %s795
          %797 = dma.done %s793, 128
        $region56: #{tpu_custom_call.1} parent=51 // pred_fallthru
          _
        // Predicated region
        $region57: #{tpu_custom_call.1} parent=51 // pred_check
          %p798 = pneg %p184
        $region58: #{tpu_custom_call.1} parent=51 // pred_check_branch
          %800 = sbr.rel (%p798) target = $region60
        $region59: #{tpu_custom_call.1} parent=51 // pred_region
          %s801 = sand.u32 %s169, 1
          %s802 = scalar_lea.sflag [#allocation6], %s801
          %s803 = sand.u32 %s169, 1
          %s804 = smul.addr %s803, 4
          %s805 = scalar_lea.vmem [#allocation5], %s804
          %806 = dma.done %s802, 64
        $region60: #{tpu_custom_call.1} parent=51 // pred_fallthru
          _
      $region52: #{tpu_custom_call.1} parent=5 // pred_fallthru
        _
    $region6: #{tpu_custom_call.1} parent=1 // loop_footer
      %s23 = sadd.s32 1, %s19
    $region7: #{tpu_custom_call.1} parent=1 // loop_footer_branch
      %18 = sbr.rel target = $region3
    $region8: #{tpu_custom_call.1} parent=1 // loop_exit
      _
    %807 = vsyncpa [#allocation4], 1
    %s808 = scalar_lea.sflag [#allocation4], 1
    %809 = vsyncpa %s808, 1
    %810 = vsyncpa [#allocation6], 1
    %s811 = scalar_lea.sflag [#allocation6], 1
    %812 = vsyncpa %s811, 1

</llo_original>
